<compile_context>
chip_gen: v5e
topology: v5e:2x2
jax: 0.10.0
libtpu: 0.0.40
codegen_flags: <defaults>
</compile_context>

<pallas_src>
import jax
import jax.numpy as jnp
from jax import lax
from jax.experimental import pallas as pl
from jax.experimental.pallas import tpu as pltpu

KERNEL = 3
STRIDE = 3          # torch MaxPool2d default: stride = kernel_size
_CHUNK = 128        # rows per inner-loop step: bounds live vregs (~48 max)


def _round_up(x, m):
    return ((x + m - 1) // m) * m


def _make_maxpool_kernel(h, w, h_out, w_out, nb):
    """Kernel over a natural-layout tile: x_ref (nb, H*W) -> o_ref (nb, Ho*Wo)."""
    n_chunks = nb // _CHUNK

    def kernel(x_ref, o_ref):
        def chunk_body(j, carry):
            r0 = pl.multiple_of(j * _CHUNK, _CHUNK)
            rows = pl.ds(r0, _CHUNK)
            # Tiny static loops over output positions (1x1 for the 5x5 input).
            for oh in range(h_out):
                for ow in range(w_out):
                    acc = None
                    for kh in range(KERNEL):
                        base = (oh * STRIDE + kh) * w + ow * STRIDE
                        # Contiguous lane strip: one window row, (CHUNK, 3).
                        strip = x_ref[rows, pl.ds(base, KERNEL)]
                        acc = strip if acc is None else jnp.maximum(acc, strip)
                    # Fold the 3 remaining lanes -> (CHUNK, 1).
                    red = jnp.max(acc, axis=1, keepdims=True)
                    o_ref[rows, pl.ds(oh * w_out + ow, 1)] = red
            return carry

        lax.fori_loop(0, n_chunks, chunk_body, 0)

    return kernel


def _choose_block_rows(m, block_rows):
    """Nearly-even, 128-multiple row blocks (minimal tail waste, balanced
    across v7x's two TensorCores)."""
    m8 = _round_up(m, 8)
    n_blocks = max(1, pl.cdiv(m8, block_rows))
    # v7x megacore: give both TensorCores a block once there is enough work.
    if n_blocks == 1 and m8 >= 2048:
        n_blocks = 2
    return _round_up(pl.cdiv(m8, n_blocks), _CHUNK)


def _maxpool_reference(x):
    return lax.reduce_window(
        x, -jnp.inf, lax.max,
        window_dimensions=(1, 1, KERNEL, KERNEL),
        window_strides=(1, 1, STRIDE, STRIDE),
        padding="VALID")


def maxpool2d(x, *, block_rows=8192, min_pallas_batch=1024, force_pallas=False):
    """x: (N, C, H, W) -> (N, C, H_out, W_out); floor (VALID) mode."""
    n, c, h, w = x.shape
    if h < KERNEL or w < KERNEL:
        raise ValueError("spatial dims must be >= kernel_size for floor-mode MaxPool2d")
    h_out = (h - KERNEL) // STRIDE + 1
    w_out = (w - KERNEL) // STRIDE + 1
    hw, ohw, m = h * w, h_out * w_out, n * c

    # Small-batch fast path: one fused XLA op beats a kernel launch.
    if m < min_pallas_batch and not force_pallas:
        return _maxpool_reference(x)

    x2 = x.reshape(m, hw)            # free row-major reshape -- NO HBM transpose

    nb = _choose_block_rows(m, block_rows)
    if m < nb:
        # Only reachable for tiny forced batches: pad rows up to one block so
        # a block never exceeds the array.  Padded rows are sliced off below
        # and never mix with real rows (reduction is per-row over lanes).
        x2 = jnp.pad(x2, ((0, nb - m), (0, 0)))
        m_arr = nb
    else:
        m_arr = m                    # ragged final block handled by Pallas masking
    n_blocks = pl.cdiv(m_arr, nb)

    out = pl.pallas_call(
        _make_maxpool_kernel(h, w, h_out, w_out, nb),
        out_shape=jax.ShapeDtypeStruct((m_arr, ohw), x.dtype),
        grid=(n_blocks,),
        in_specs=[pl.BlockSpec((nb, hw), lambda i: (i, 0))],
        out_specs=pl.BlockSpec((nb, ohw), lambda i: (i, 0)),
        compiler_params=pltpu.CompilerParams(
            # Independent row-blocks: shard across TensorCores on megacore parts.
            dimension_semantics=("parallel",),
            # in+out tiles, double-buffered, lane-padded to 128:
            # 4 * nb * 128 * 4 B = 16 MiB at nb=8192 -> raise v5e's 16 MiB default;
            # still well under 64 MiB physical VMEM per v7x TensorCore.
            vmem_limit_bytes=32 * 1024 * 1024),
    )(x2)

    if m_arr != m:
        out = out[:m]
    return out.reshape(n, c, h_out, w_out)


class MyNetwork:
    """JAX/Pallas counterpart of the PyTorch `myNetwork` (no parameters)."""

    def __call__(self, x, *, force_pallas=False):
        return maxpool2d(x, force_pallas=force_pallas)


if __name__ == "__main__":
    net = MyNetwork()

    # Deployment shape: torch.reshape(input, (-1, 1, 5, 5)) with batch=2.
    x = jax.random.normal(jax.random.PRNGKey(0), (2, 1, 5, 5), dtype=jnp.float32)
    ref = _maxpool_reference(x)

    # Force the Pallas path so the kernel is exercised on the module shape.
    out = jax.block_until_ready(net(x, force_pallas=True))
    assert out.shape == (2, 1, 1, 1), out.shape
    assert jnp.allclose(out, ref), "Pallas kernel mismatch (batch=2)"

    # Larger odd batch: balanced 128-multiple blocks + ragged final block,
    # 2-step 'parallel' grid (both v7x TensorCores busy).
    x2 = jax.random.normal(jax.random.PRNGKey(1), (2500, 1, 5, 5), dtype=jnp.float32)
    out2 = jax.block_until_ready(net(x2))           # Pallas path (m >= 1024)
    ref2 = _maxpool_reference(x2)
    assert out2.shape == (2500, 1, 1, 1), out2.shape
    assert jnp.allclose(out2, ref2), "Pallas kernel mismatch (batch=2500)"

    # Small-batch fast path (single XLA reduce_window dispatch).
    out3 = jax.block_until_ready(net(x))
    assert jnp.allclose(out3, ref), "fast-path mismatch"

    print("KERNEL_OK")
</pallas_src>

<mosaic_0001>
module attributes {stable_mosaic.version = 11 : i64} {
  func.func @kernel(%arg0: i32, %arg1: memref<128x25xf32, #tpu.memory_space<vmem>>, %arg2: memref<128x1xf32, #tpu.memory_space<vmem>>) attributes {dimension_semantics = [#tpu.dimension_semantics<parallel>], iteration_bounds = array<i64: 1>, scalar_prefetch = 0 : i64, scratch_operands = 0 : i64, tpu.core_type = #tpu.core_type<tc>, window_params = [{transform_indices = @transform_0, window_bounds = array<i64: 128, 25>}, {transform_indices = @transform_1, window_bounds = array<i64: 128, 1>}]} {
    %c0_i32 = arith.constant 0 : i32
    %c128_i32 = arith.constant 128 : i32
    %0 = arith.muli %c0_i32, %c128_i32 : i32
    %1 = tpu.assume_multiple %0, 128 : i32
    %2 = arith.index_cast %1 : i32 to index
    %c0 = arith.constant 0 : index
    %3 = vector.load %arg1[%2, %c0] : memref<128x25xf32, #tpu.memory_space<vmem>>, vector<128x3xf32>
    %4 = arith.index_cast %1 : i32 to index
    %c5 = arith.constant 5 : index
    %5 = vector.load %arg1[%4, %c5] : memref<128x25xf32, #tpu.memory_space<vmem>>, vector<128x3xf32>
    %6 = arith.maximumf %3, %5 : vector<128x3xf32>
    %7 = arith.index_cast %1 : i32 to index
    %c10 = arith.constant 10 : index
    %8 = vector.load %arg1[%7, %c10] : memref<128x25xf32, #tpu.memory_space<vmem>>, vector<128x3xf32>
    %9 = arith.maximumf %6, %8 : vector<128x3xf32>
    %cst = arith.constant dense<0xFF800000> : vector<128xf32>
    %10 = vector.multi_reduction <maximumf>, %9, %cst [1] : vector<128x3xf32> to vector<128xf32>
    %11 = vector.shape_cast %10 : vector<128xf32> to vector<128x1xf32>
    %12 = arith.index_cast %1 : i32 to index
    %c0_0 = arith.constant 0 : index
    %13 = vector.load %arg2[%12, %c0_0] : memref<128x1xf32, #tpu.memory_space<vmem>>, vector<128x1xf32>
    tpu.vector_store %arg2[%12, %c0_0], %11 {strides = array<i32>} : memref<128x1xf32, #tpu.memory_space<vmem>>, vector<128x1xf32>,
    %c1_i32 = arith.constant 1 : i32
    return
  }
  func.func @transform_0(%arg0: i32) -> (i32, i32) {
    %c0_i32 = arith.constant 0 : i32
    %c0_i32_0 = arith.constant 0 : i32
    return %arg0, %c0_i32 : i32, i32
  }
  func.func @transform_1(%arg0: i32) -> (i32, i32) {
    %c0_i32 = arith.constant 0 : i32
    %c0_i32_0 = arith.constant 0 : i32
    return %arg0, %c0_i32 : i32, i32
  }
}

</mosaic_0001>

<llo_original>
// kernel: tpu_custom_call.1
$region0: #{tpu_custom_call.1}
  #allocation0 [shape = 'u32[]', space=smem, size = 0x4, offset = 0x4, fixed_abs, tag = 'smem constant byte address 0x4 - core index']
  #allocation1 [shape = 'u32[72,128]{1,0:T(1,128)}', space=vmem, size = 0x9000, scoped, tag = 'internal scratch']
  %s0 = inlined_call_operand.vmem [shape: f32[128,25], index: 0, kind: input, shape index: {}]
  %s1 = inlined_call_operand.vmem [shape: f32[128,1], index: 1, kind: output, shape index: {}]
  %s2 = sld [smem:[#allocation0]]
  $region14: #{tpu_custom_call.1} parent=0
    _
  %s4 = ssub.s32 1, %s2
  %s5 = scalar_select 0, %s4, %s2
  // Predicated region
  $region2: #{tpu_custom_call.1} parent=0 // pred_check
    _
  $region3: #{tpu_custom_call.1} parent=0 // pred_check_branch
    %7 = sbr.rel (0) target = $region5
  $region4: #{tpu_custom_call.1} parent=0 // pred_region
    _
  $region5: #{tpu_custom_call.1} parent=0 // pred_fallthru
    _
  %v8 = vld [vmem:[%s0] sm:$0xff]
  %v9 = vld [vmem:[%s0 + $0x8] sm:$0xff]
  %v10 = vld [vmem:[%s0 + $0x10] sm:$0xff]
  %v11 = vld [vmem:[%s0 + $0x18] sm:$0xff]
  %v12 = vld [vmem:[%s0 + $0x20] sm:$0xff]
  %v13 = vld [vmem:[%s0 + $0x28] sm:$0xff]
  %v14 = vld [vmem:[%s0 + $0x30] sm:$0xff]
  %v15 = vld [vmem:[%s0 + $0x38] sm:$0xff]
  %v16 = vld [vmem:[%s0 + $0x40] sm:$0xff]
  %v17 = vld [vmem:[%s0 + $0x48] sm:$0xff]
  %v18 = vld [vmem:[%s0 + $0x50] sm:$0xff]
  %v19 = vld [vmem:[%s0 + $0x58] sm:$0xff]
  %v20 = vld [vmem:[%s0 + $0x60] sm:$0xff]
  %v21 = vld [vmem:[%s0 + $0x68] sm:$0xff]
  %v22 = vld [vmem:[%s0 + $0x70] sm:$0xff]
  %v23 = vld [vmem:[%s0 + $0x78] sm:$0xff]
  %40 = vrot.lane.b32.xlu0 %v8, 123
  %v41 = vpop.permute.xlu0 %40
  %42 = vrot.lane.b32.xlu0 %v9, 123
  %v43 = vpop.permute.xlu0 %42
  %44 = vrot.lane.b32.xlu0 %v10, 123
  %v45 = vpop.permute.xlu0 %44
  %46 = vrot.lane.b32.xlu0 %v11, 123
  %v47 = vpop.permute.xlu0 %46
  %48 = vrot.lane.b32.xlu0 %v12, 123
  %v49 = vpop.permute.xlu0 %48
  %50 = vrot.lane.b32.xlu0 %v13, 123
  %v51 = vpop.permute.xlu0 %50
  %52 = vrot.lane.b32.xlu0 %v14, 123
  %v53 = vpop.permute.xlu0 %52
  %54 = vrot.lane.b32.xlu0 %v15, 123
  %v55 = vpop.permute.xlu0 %54
  %56 = vrot.lane.b32.xlu0 %v16, 123
  %v57 = vpop.permute.xlu0 %56
  %58 = vrot.lane.b32.xlu0 %v17, 123
  %v59 = vpop.permute.xlu0 %58
  %60 = vrot.lane.b32.xlu0 %v18, 123
  %v61 = vpop.permute.xlu0 %60
  %62 = vrot.lane.b32.xlu0 %v19, 123
  %v63 = vpop.permute.xlu0 %62
  %64 = vrot.lane.b32.xlu0 %v20, 123
  %v65 = vpop.permute.xlu0 %64
  %66 = vrot.lane.b32.xlu0 %v21, 123
  %v67 = vpop.permute.xlu0 %66
  %68 = vrot.lane.b32.xlu0 %v22, 123
  %v69 = vpop.permute.xlu0 %68
  %70 = vrot.lane.b32.xlu0 %v23, 123
  %v71 = vpop.permute.xlu0 %70
  %v88 = vmax.f32 %v8, %v41
  %v89 = vmax.f32 %v9, %v43
  %v90 = vmax.f32 %v10, %v45
  %v91 = vmax.f32 %v11, %v47
  %v92 = vmax.f32 %v12, %v49
  %v93 = vmax.f32 %v13, %v51
  %v94 = vmax.f32 %v14, %v53
  %v95 = vmax.f32 %v15, %v55
  %v96 = vmax.f32 %v16, %v57
  %v97 = vmax.f32 %v17, %v59
  %v98 = vmax.f32 %v18, %v61
  %v99 = vmax.f32 %v19, %v63
  %v100 = vmax.f32 %v20, %v65
  %v101 = vmax.f32 %v21, %v67
  %v102 = vmax.f32 %v22, %v69
  %v103 = vmax.f32 %v23, %v71
  %104 = vrot.lane.b32.xlu0 %v8, 118
  %v105 = vpop.permute.xlu0 %104
  %106 = vrot.lane.b32.xlu0 %v9, 118
  %v107 = vpop.permute.xlu0 %106
  %108 = vrot.lane.b32.xlu0 %v10, 118
  %v109 = vpop.permute.xlu0 %108
  %110 = vrot.lane.b32.xlu0 %v11, 118
  %v111 = vpop.permute.xlu0 %110
  %112 = vrot.lane.b32.xlu0 %v12, 118
  %v113 = vpop.permute.xlu0 %112
  %114 = vrot.lane.b32.xlu0 %v13, 118
  %v115 = vpop.permute.xlu0 %114
  %116 = vrot.lane.b32.xlu0 %v14, 118
  %v117 = vpop.permute.xlu0 %116
  %118 = vrot.lane.b32.xlu0 %v15, 118
  %v119 = vpop.permute.xlu0 %118
  %120 = vrot.lane.b32.xlu0 %v16, 118
  %v121 = vpop.permute.xlu0 %120
  %122 = vrot.lane.b32.xlu0 %v17, 118
  %v123 = vpop.permute.xlu0 %122
  %124 = vrot.lane.b32.xlu0 %v18, 118
  %v125 = vpop.permute.xlu0 %124
  %126 = vrot.lane.b32.xlu0 %v19, 118
  %v127 = vpop.permute.xlu0 %126
  %128 = vrot.lane.b32.xlu0 %v20, 118
  %v129 = vpop.permute.xlu0 %128
  %130 = vrot.lane.b32.xlu0 %v21, 118
  %v131 = vpop.permute.xlu0 %130
  %132 = vrot.lane.b32.xlu0 %v22, 118
  %v133 = vpop.permute.xlu0 %132
  %134 = vrot.lane.b32.xlu0 %v23, 118
  %v135 = vpop.permute.xlu0 %134
  %v152 = vmax.f32 %v88, %v105
  %v153 = vmax.f32 %v89, %v107
  %v154 = vmax.f32 %v90, %v109
  %v155 = vmax.f32 %v91, %v111
  %v156 = vmax.f32 %v92, %v113
  %v157 = vmax.f32 %v93, %v115
  %v158 = vmax.f32 %v94, %v117
  %v159 = vmax.f32 %v95, %v119
  %v160 = vmax.f32 %v96, %v121
  %v161 = vmax.f32 %v97, %v123
  %v162 = vmax.f32 %v98, %v125
  %v163 = vmax.f32 %v99, %v127
  %v164 = vmax.f32 %v100, %v129
  %v165 = vmax.f32 %v101, %v131
  %v166 = vmax.f32 %v102, %v133
  %v167 = vmax.f32 %v103, %v135
  %vm168 = vcmask 23552
  %v169 = vsel %vm168, %v152, -inf
  %170 = vmax.xlane.f32.xlu0 %v169
  %v171 = vpop.xlane.xlu0 %170
  %v172 = vsel %vm168, %v153, -inf
  %173 = vmax.xlane.f32.xlu0 %v172
  %v174 = vpop.xlane.xlu0 %173
  %v175 = vsel %vm168, %v154, -inf
  %176 = vmax.xlane.f32.xlu0 %v175
  %v177 = vpop.xlane.xlu0 %176
  %v178 = vsel %vm168, %v155, -inf
  %179 = vmax.xlane.f32.xlu0 %v178
  %v180 = vpop.xlane.xlu0 %179
  %v181 = vsel %vm168, %v156, -inf
  %182 = vmax.xlane.f32.xlu0 %v181
  %v183 = vpop.xlane.xlu0 %182
  %v184 = vsel %vm168, %v157, -inf
  %185 = vmax.xlane.f32.xlu0 %v184
  %v186 = vpop.xlane.xlu0 %185
  %v187 = vsel %vm168, %v158, -inf
  %188 = vmax.xlane.f32.xlu0 %v187
  %v189 = vpop.xlane.xlu0 %188
  %v190 = vsel %vm168, %v159, -inf
  %191 = vmax.xlane.f32.xlu0 %v190
  %v192 = vpop.xlane.xlu0 %191
  %v193 = vsel %vm168, %v160, -inf
  %194 = vmax.xlane.f32.xlu0 %v193
  %v195 = vpop.xlane.xlu0 %194
  %v196 = vsel %vm168, %v161, -inf
  %197 = vmax.xlane.f32.xlu0 %v196
  %v198 = vpop.xlane.xlu0 %197
  %v199 = vsel %vm168, %v162, -inf
  %200 = vmax.xlane.f32.xlu0 %v199
  %v201 = vpop.xlane.xlu0 %200
  %v202 = vsel %vm168, %v163, -inf
  %203 = vmax.xlane.f32.xlu0 %v202
  %v204 = vpop.xlane.xlu0 %203
  %v205 = vsel %vm168, %v164, -inf
  %206 = vmax.xlane.f32.xlu0 %v205
  %v207 = vpop.xlane.xlu0 %206
  %v208 = vsel %vm168, %v165, -inf
  %209 = vmax.xlane.f32.xlu0 %v208
  %v210 = vpop.xlane.xlu0 %209
  %v211 = vsel %vm168, %v166, -inf
  %212 = vmax.xlane.f32.xlu0 %v211
  %v213 = vpop.xlane.xlu0 %212
  %v214 = vsel %vm168, %v167, -inf
  %215 = vmax.xlane.f32.xlu0 %v214
  %v216 = vpop.xlane.xlu0 %215
  %vm217 = vcmask 7168
  %218 = vst.msk [vmem:[%s1] sm:$0xff] %vm217, %v171
  %219 = vst.msk [vmem:[%s1 + $0x8] sm:$0xff] %vm217, %v174
  %220 = vst.msk [vmem:[%s1 + $0x10] sm:$0xff] %vm217, %v177
  %221 = vst.msk [vmem:[%s1 + $0x18] sm:$0xff] %vm217, %v180
  %222 = vst.msk [vmem:[%s1 + $0x20] sm:$0xff] %vm217, %v183
  %223 = vst.msk [vmem:[%s1 + $0x28] sm:$0xff] %vm217, %v186
  %224 = vst.msk [vmem:[%s1 + $0x30] sm:$0xff] %vm217, %v189
  %225 = vst.msk [vmem:[%s1 + $0x38] sm:$0xff] %vm217, %v192
  %226 = vst.msk [vmem:[%s1 + $0x40] sm:$0xff] %vm217, %v195
  %227 = vst.msk [vmem:[%s1 + $0x48] sm:$0xff] %vm217, %v198
  %228 = vst.msk [vmem:[%s1 + $0x50] sm:$0xff] %vm217, %v201
  %229 = vst.msk [vmem:[%s1 + $0x58] sm:$0xff] %vm217, %v204
  %230 = vst.msk [vmem:[%s1 + $0x60] sm:$0xff] %vm217, %v207
  %231 = vst.msk [vmem:[%s1 + $0x68] sm:$0xff] %vm217, %v210
  %232 = vst.msk [vmem:[%s1 + $0x70] sm:$0xff] %vm217, %v213
  %233 = vst.msk [vmem:[%s1 + $0x78] sm:$0xff] %vm217, %v216
  // Predicated region
  $region6: #{tpu_custom_call.1} parent=0 // pred_check
    _
  $region7: #{tpu_custom_call.1} parent=0 // pred_check_branch
    %235 = sbr.rel (0) target = $region9
  $region8: #{tpu_custom_call.1} parent=0 // pred_region
    _
  $region9: #{tpu_custom_call.1} parent=0 // pred_fallthru
    _
  // Predicated region
  $region10: #{tpu_custom_call.1} parent=0 // pred_check
    _
  $region11: #{tpu_custom_call.1} parent=0 // pred_check_branch
    %237 = sbr.rel (0) target = $region13
  $region12: #{tpu_custom_call.1} parent=0 // pred_region
    _
  $region13: #{tpu_custom_call.1} parent=0 // pred_fallthru
    _

</llo_original>
